<compile_context>
chip_gen: v6e
topology: v6e:2x2x1
jax: 0.10.0
libtpu: 0.0.40
codegen_flags: <defaults>
</compile_context>

<pallas_src>
import functools

import jax
import jax.numpy as jnp
import numpy as np
from jax.experimental import pallas as pl
from jax.experimental.pallas import tpu as pltpu


def _round_up(x, m):
    return ((x + m - 1) // m) * m


def _cdiv(a, b):
    return (a + b - 1) // b


# ---------------------------------------------------------------------------
# Pallas kernel: fused causal conv bank (im2col matmul) + bias + ReLU
# (+ optional running max-pool over time as a grid reduction)
# ---------------------------------------------------------------------------
def _conv_kernel(x_ref, w_ref, b_ref, o_ref, halo_ref, max_ref, *,
                 k_max, halo, tb, tl, oc_pad, l_real, l_pad, pool):
    j = pl.program_id(1)
    n_j = pl.num_programs(1)
    c = halo_ref.shape[-1]

    # (Re)initialize the causal left context (zeros) at the first L tile of
    # every batch block.
    if halo > 0:
        @pl.when(j == 0)
        def _():
            halo_ref[:, 0:halo, :] = jnp.zeros((tb, halo, c), halo_ref.dtype)

    # Stage the current (TB, TL, C) activation tile. `halo` is a multiple of 8
    # so this store is sublane-aligned.
    halo_ref[:, halo:halo + tl, :] = x_ref[...]

    # im2col: tap d multiplies x[t - d]; build one (TB*TL, K_max*C) matrix so
    # the whole tap sum runs as a single MXU matmul.
    cols = [halo_ref[:, halo - d: halo - d + tl, :] for d in range(k_max)]
    im2col = jnp.concatenate(cols, axis=-1)               # (TB, TL, K_max*C)
    kc = im2col.shape[-1]
    im2col = im2col.reshape(tb * tl, kc)

    acc = jnp.dot(im2col, w_ref[...], preferred_element_type=jnp.float32)
    acc = acc + b_ref[...]                                 # (TB*TL, OC_pad)
    out = jnp.maximum(acc, 0.0)

    # Carry the trailing `halo` rows of this tile for the next L tile.
    if halo > 0:
        halo_ref[:, 0:halo, :] = halo_ref[:, tl:tl + halo, :]

    out3 = out.reshape(tb, tl, oc_pad)

    if not pool:
        o_ref[...] = out3.astype(o_ref.dtype)
    else:
        if l_pad != l_real:
            # Rows in the right L padding must never win the max; ReLU output
            # is >= 0, so 0 is a safe neutral value.
            t_idx = j * tl + jax.lax.broadcasted_iota(jnp.int32, (tb, tl, 1), 1)
            out3 = jnp.where(t_idx < l_real, out3, 0.0)
        tile_max = jnp.max(out3, axis=1)                   # (TB, OC_pad)

        @pl.when(j == 0)
        def _():
            max_ref[...] = tile_max

        @pl.when(j > 0)
        def _():
            max_ref[...] = jnp.maximum(max_ref[...], tile_max)

        @pl.when(j == n_j - 1)
        def _():
            o_ref[:, 0, :] = max_ref[...].astype(o_ref.dtype)


# ---------------------------------------------------------------------------
# Wrapper: tiling, padding, pallas_call
# ---------------------------------------------------------------------------
def _run_layer(x_nlc, w_flat, b_pad, *, k_max, max_pool, compute_dtype,
               block_l=None, block_b=None):
    """x_nlc: (N, L, C); w_flat: (K_max*C, OC_pad); b_pad: (1, OC_pad) f32."""
    N, L, C = x_nlc.shape
    KC, OC_pad = w_flat.shape
    assert KC == k_max * C

    # ---- tile selection -------------------------------------------------
    if block_l is None:
        n_tiles = _cdiv(L, 512)
        tl = _round_up(_cdiv(L, n_tiles), 8)
    else:
        tl = _round_up(block_l, 8)
    tl = max(tl, 8)
    l_pad = _round_up(L, tl)

    if block_b is None:
        tb = max(1, min(N, 256 // tl)) if tl < 256 else 1   # fold batch -> M
    else:
        tb = max(1, min(block_b, N))
    n_pad = _round_up(N, tb)

    halo = _round_up(k_max - 1, 8) if k_max > 1 else 0

    # ---- pad + cast input ------------------------------------------------
    x = x_nlc.astype(compute_dtype)
    if n_pad != N or l_pad != L:
        x = jnp.pad(x, ((0, n_pad - N), (0, l_pad - L), (0, 0)))

    # ---- specs ------------------------------------------------------------
    in_specs = [
        pl.BlockSpec((tb, tl, C), lambda nb, j: (nb, j, 0)),
        pl.BlockSpec((KC, OC_pad), lambda nb, j: (0, 0)),
        pl.BlockSpec((1, OC_pad), lambda nb, j: (0, 0)),
    ]
    if max_pool:
        out_shape = jax.ShapeDtypeStruct((n_pad, 1, OC_pad), jnp.float32)
        out_specs = pl.BlockSpec((tb, 1, OC_pad), lambda nb, j: (nb, 0, 0))
        out_block_elems = tb * OC_pad
    else:
        out_shape = jax.ShapeDtypeStruct((n_pad, l_pad, OC_pad), jnp.float32)
        out_specs = pl.BlockSpec((tb, tl, OC_pad), lambda nb, j: (nb, j, 0))
        out_block_elems = tb * tl * OC_pad

    scratch_shapes = [
        pltpu.VMEM((tb, tl + halo, C), compute_dtype),   # halo / staging buffer
        pltpu.VMEM((tb, OC_pad), jnp.float32),           # running max (pool)
    ]

    # ---- explicit VMEM budget (headroom, capped well below v7x physical) --
    cb = jnp.dtype(compute_dtype).itemsize
    est = (2 * tb * tl * C * cb                       # double-buffered input
           + 2 * out_block_elems * 4                  # double-buffered output
           + 2 * (KC * OC_pad * cb + OC_pad * 4)      # weights + bias
           + tb * (tl + halo) * C * cb + tb * OC_pad * 4   # scratch
           + tb * tl * (KC * cb + 2 * OC_pad * 4))    # im2col + acc temps
    vmem_limit = int(min(max(2 * est, 32 * 2 ** 20), 48 * 2 ** 20))

    kernel = functools.partial(
        _conv_kernel, k_max=k_max, halo=halo, tb=tb, tl=tl,
        oc_pad=OC_pad, l_real=L, l_pad=l_pad, pool=max_pool)

    out = pl.pallas_call(
        kernel,
        out_shape=out_shape,
        grid=(n_pad // tb, l_pad // tl),
        in_specs=in_specs,
        out_specs=out_specs,
        scratch_shapes=scratch_shapes,
        compiler_params=pltpu.CompilerParams(
            dimension_semantics=("parallel", "arbitrary"),
            vmem_limit_bytes=vmem_limit),
    )(x, w_flat, b_pad)

    if max_pool:
        return out[:N, 0, :]          # (N, OC_pad)
    return out[:N, :L, :]             # (N, L, OC_pad)


# ---------------------------------------------------------------------------
# Weight packing: PyTorch Conv1d weights -> one (K_max*C, OC_pad) matrix
# ---------------------------------------------------------------------------
def _pack_layer(weights, biases, k_max, compute_dtype):
    """weights: list of (F, C, k_i) PyTorch-convention conv weights."""
    C = int(weights[0].shape[1])
    w_np = [np.asarray(w, np.float32) for w in weights]
    b_np = np.concatenate([np.asarray(b, np.float32) for b in biases])
    oc = sum(int(w.shape[0]) for w in w_np)
    oc_pad = _round_up(oc, 128)                       # lane-dense output

    w_flat = np.zeros((k_max * C, oc_pad), np.float32)
    col = 0
    for w in w_np:
        f, c, k = w.shape
        for d in range(k):
            # reversed-delay tap d multiplies x[t - d]
            w_flat[d * C:(d + 1) * C, col:col + f] = w[:, :, k - 1 - d].T
        col += f
    b_pad = np.zeros((1, oc_pad), np.float32)
    b_pad[0, :oc] = b_np
    return jnp.asarray(w_flat, compute_dtype), jnp.asarray(b_pad, jnp.float32), oc


# ---------------------------------------------------------------------------
# Module wrapper
# ---------------------------------------------------------------------------
class PallasCNN:
    """Mirrors the PyTorch CNN module (same per-layer conv shapes)."""

    def __init__(self, embedding_dim, num_layers, max_pool_over_time=False,
                 filters=(3, 4, 5), filter_num=100, key=None,
                 compute_dtype=jnp.float32, block_l=None, block_b=None):
        if key is None:
            key = jax.random.PRNGKey(0)
        self.max_pool = max_pool_over_time
        self.k_max = max(filters)
        self.compute_dtype = compute_dtype
        self.block_l = block_l
        self.block_b = block_b
        self.layers_raw = []      # (weights, biases) per layer, PyTorch shapes
        self.layers_packed = []   # (W_flat, b_pad, OC) per layer
        for _ in range(num_layers):
            ws, bs = [], []
            for filt in filters:
                in_channels = embedding_dim   # same as the PyTorch module (all layers)
                key, kw, kb = jax.random.split(key, 3)
                bound = 1.0 / np.sqrt(in_channels * filt)  # PyTorch Conv1d default init
                w = jax.random.uniform(kw, (filter_num, in_channels, filt),
                                       jnp.float32, -bound, bound)
                b = jax.random.uniform(kb, (filter_num,), jnp.float32, -bound, bound)
                ws.append(w)
                bs.append(b)
            self.layers_raw.append((ws, bs))
            self.layers_packed.append(_pack_layer(ws, bs, self.k_max, compute_dtype))

    def __call__(self, x_ncl):
        # TODO(synk): when embedding_dim == 3*filter_num (multi-layer case), fuse
        # all layers into a single pallas_call with the activation resident in
        # VMEM to avoid the per-layer HBM round-trip.
        act = jnp.transpose(x_ncl, (0, 2, 1))        # NCL -> NLC
        n_layers = len(self.layers_packed)
        for i, (w_flat, b_pad, oc) in enumerate(self.layers_packed):
            pool_here = self.max_pool and (i == n_layers - 1)
            act = _run_layer(act, w_flat, b_pad, k_max=self.k_max,
                             max_pool=pool_here, compute_dtype=self.compute_dtype,
                             block_l=self.block_l, block_b=self.block_b)
            act = act[..., :oc]                      # drop OC lane padding
            if pool_here:
                return act                           # (N, OC)
        return jnp.transpose(act, (0, 2, 1))         # (N, OC, L)


# ---------------------------------------------------------------------------
# Pure-JAX reference (mirrors the PyTorch forward exactly)
# ---------------------------------------------------------------------------
def ref_forward(x_ncl, layers_raw, max_pool):
    act = x_ncl
    for ws, bs in layers_raw:
        outs = []
        for w, b in zip(ws, bs):
            k = w.shape[-1]
            xp = jnp.pad(act, ((0, 0), (0, 0), (k - 1, 0)))
            y = jax.lax.conv_general_dilated(
                xp, w, window_strides=(1,), padding="VALID",
                dimension_numbers=("NCH", "OIH", "NCH"))
            outs.append(y + b[None, :, None])
        act = jax.nn.relu(jnp.concatenate(outs, axis=1))
    if max_pool:
        act = jnp.max(act, axis=-1)
    return act


# ---------------------------------------------------------------------------
if __name__ == "__main__":
    key = jax.random.PRNGKey(0)
    N, C, L = 2, 32, 16          # batch, embedding_dim, seq_len
    filter_num = 16
    num_layers = 1               # multi-layer only well-defined if C == 3*filter_num
    key, kx, kp = jax.random.split(key, 3)
    x = jax.random.normal(kx, (N, C, L), jnp.float32)   # PyTorch NCL layout

    # 1) no-pool, f32 compute: output (N, 3*filter_num, L)
    model = PallasCNN(C, num_layers, max_pool_over_time=False,
                      filter_num=filter_num, key=kp)
    out = jax.block_until_ready(model(x))
    ref = ref_forward(x, model.layers_raw, max_pool=False)
    np.testing.assert_allclose(np.asarray(out), np.asarray(ref), rtol=1e-5, atol=1e-5)

    # 2) pooled, f32: output (N, 3*filter_num)
    model_p = PallasCNN(C, num_layers, max_pool_over_time=True,
                        filter_num=filter_num, key=kp)
    out_p = jax.block_until_ready(model_p(x))
    ref_p = ref_forward(x, model_p.layers_raw, max_pool=True)
    np.testing.assert_allclose(np.asarray(out_p), np.asarray(ref_p), rtol=1e-5, atol=1e-5)

    # 3) ragged shapes: exercises the L-tile carry, right-pad masking and
    #    batch-block zero padding (N=3 with TB=2, L=20 with TL=8).
    N3, L3 = 3, 20
    key, kx3, kp3 = jax.random.split(key, 3)
    x3 = jax.random.normal(kx3, (N3, C, L3), jnp.float32)
    model3p = PallasCNN(C, 1, max_pool_over_time=True, filter_num=filter_num,
                        key=kp3, block_l=8, block_b=2)
    out3p = jax.block_until_ready(model3p(x3))
    ref3p = ref_forward(x3, model3p.layers_raw, max_pool=True)
    np.testing.assert_allclose(np.asarray(out3p), np.asarray(ref3p), rtol=1e-5, atol=1e-5)

    model3n = PallasCNN(C, 1, max_pool_over_time=False, filter_num=filter_num,
                        key=kp3, block_l=8, block_b=2)
    out3n = jax.block_until_ready(model3n(x3))
    ref3n = ref_forward(x3, model3n.layers_raw, max_pool=False)
    np.testing.assert_allclose(np.asarray(out3n), np.asarray(ref3n), rtol=1e-5, atol=1e-5)

    # 4) bf16 matmul inputs (f32 accumulation) — looser tolerance
    model_bf = PallasCNN(C, num_layers, max_pool_over_time=False,
                         filter_num=filter_num, key=kp,
                         compute_dtype=jnp.bfloat16)
    out_bf = jax.block_until_ready(model_bf(x))
    np.testing.assert_allclose(np.asarray(out_bf), np.asarray(ref), rtol=5e-2, atol=5e-2)

    print("KERNEL_OK")
</pallas_src>

<mosaic_0001>
module attributes {stable_mosaic.version = 11 : i64} {
  func.func @_conv_kernel(%arg0: i32, %arg1: i32, %arg2: memref<2x16x32xf32, #tpu.memory_space<vmem>>, %arg3: memref<160x128xf32, #tpu.memory_space<vmem>>, %arg4: memref<1x128xf32, #tpu.memory_space<vmem>>, %arg5: memref<2x16x128xf32, #tpu.memory_space<vmem>>, %arg6: memref<2x24x32xf32, #tpu.memory_space<vmem>>, %arg7: memref<2x128xf32, #tpu.memory_space<vmem>>) attributes {dimension_semantics = [#tpu.dimension_semantics<parallel>, #tpu.dimension_semantics<arbitrary>], iteration_bounds = array<i64: 1, 1>, scalar_prefetch = 0 : i64, scratch_operands = 2 : i64, tpu.core_type = #tpu.core_type<tc>, window_params = [{transform_indices = @transform_0, window_bounds = array<i64: 2, 16, 32>}, {pipeline_mode = #tpu.pipeline_mode<synchronous>, transform_indices = @transform_1, window_bounds = array<i64: 160, 128>}, {pipeline_mode = #tpu.pipeline_mode<synchronous>, transform_indices = @transform_2, window_bounds = array<i64: 1, 128>}, {transform_indices = @transform_3, window_bounds = array<i64: 2, 16, 128>}]} {
    %c0_i32 = arith.constant 0 : i32
    %0 = arith.cmpi eq, %arg1, %c0_i32 : i32
    %1 = arith.extui %0 : i1 to i32
    %c0_i32_0 = arith.constant 0 : i32
    %2 = arith.cmpi ne, %1, %c0_i32_0 : i32
    scf.if %2 {
      %cst_29 = arith.constant 0.000000e+00 : f32
      %23 = vector.broadcast %cst_29 : f32 to vector<2x8x32xf32>
      %c0_30 = arith.constant 0 : index
      %c0_31 = arith.constant 0 : index
      %c0_32 = arith.constant 0 : index
      %24 = vector.load %arg6[%c0_30, %c0_31, %c0_32] : memref<2x24x32xf32, #tpu.memory_space<vmem>>, vector<2x8x32xf32>
      tpu.vector_store %arg6[%c0_30, %c0_31, %c0_32], %23 {strides = array<i32>} : memref<2x24x32xf32, #tpu.memory_space<vmem>>, vector<2x8x32xf32>,
    } else {
    }
    %c0 = arith.constant 0 : index
    %c0_1 = arith.constant 0 : index
    %c0_2 = arith.constant 0 : index
    %3 = vector.load %arg2[%c0, %c0_1, %c0_2] : memref<2x16x32xf32, #tpu.memory_space<vmem>>, vector<2x16x32xf32>
    %c0_3 = arith.constant 0 : index
    %c8 = arith.constant 8 : index
    %c0_4 = arith.constant 0 : index
    %4 = vector.load %arg6[%c0_3, %c8, %c0_4] : memref<2x24x32xf32, #tpu.memory_space<vmem>>, vector<2x16x32xf32>
    tpu.vector_store %arg6[%c0_3, %c8, %c0_4], %3 {strides = array<i32>} : memref<2x24x32xf32, #tpu.memory_space<vmem>>, vector<2x16x32xf32>,
    %c0_5 = arith.constant 0 : index
    %c8_6 = arith.constant 8 : index
    %c0_7 = arith.constant 0 : index
    %5 = vector.load %arg6[%c0_5, %c8_6, %c0_7] : memref<2x24x32xf32, #tpu.memory_space<vmem>>, vector<2x16x32xf32>
    %c0_8 = arith.constant 0 : index
    %c7 = arith.constant 7 : index
    %c0_9 = arith.constant 0 : index
    %6 = vector.load %arg6[%c0_8, %c7, %c0_9] : memref<2x24x32xf32, #tpu.memory_space<vmem>>, vector<2x16x32xf32>
    %c0_10 = arith.constant 0 : index
    %c6 = arith.constant 6 : index
    %c0_11 = arith.constant 0 : index
    %7 = vector.load %arg6[%c0_10, %c6, %c0_11] : memref<2x24x32xf32, #tpu.memory_space<vmem>>, vector<2x16x32xf32>
    %c0_12 = arith.constant 0 : index
    %c5 = arith.constant 5 : index
    %c0_13 = arith.constant 0 : index
    %8 = vector.load %arg6[%c0_12, %c5, %c0_13] : memref<2x24x32xf32, #tpu.memory_space<vmem>>, vector<2x16x32xf32>
    %c0_14 = arith.constant 0 : index
    %c4 = arith.constant 4 : index
    %c0_15 = arith.constant 0 : index
    %9 = vector.load %arg6[%c0_14, %c4, %c0_15] : memref<2x24x32xf32, #tpu.memory_space<vmem>>, vector<2x16x32xf32>
    %10 = tpu.concatenate %5, %6, %7, %8, %9 in 2 : vector<2x16x32xf32>, vector<2x16x32xf32>, vector<2x16x32xf32>, vector<2x16x32xf32>, vector<2x16x32xf32> -> vector<2x16x160xf32>
    %11 = vector.shape_cast %10 : vector<2x16x160xf32> to vector<32x160xf32>
    %c0_16 = arith.constant 0 : index
    %c0_17 = arith.constant 0 : index
    %12 = vector.load %arg3[%c0_16, %c0_17] : memref<160x128xf32, #tpu.memory_space<vmem>>, vector<160x128xf32>
    %cst = arith.constant dense<0.000000e+00> : vector<32x128xf32>
    %13 = tpu.matmul %11, %12, %cst {dimension_numbers = #tpu.dot_dimension_numbers<[1], [0], [0], [1], [0, 0, 1, 1], [], []>} : vector<32x160xf32>, vector<160x128xf32>, vector<32x128xf32> -> vector<32x128xf32>
    %c0_18 = arith.constant 0 : index
    %c0_19 = arith.constant 0 : index
    %14 = vector.load %arg4[%c0_18, %c0_19] : memref<1x128xf32, #tpu.memory_space<vmem>>, vector<1x128xf32>
    %15 = vector.broadcast %14 : vector<1x128xf32> to vector<32x128xf32>
    %16 = arith.addf %13, %15 : vector<32x128xf32>
    %cst_20 = arith.constant 0.000000e+00 : f32
    %17 = vector.broadcast %cst_20 : f32 to vector<32x128xf32>
    %18 = arith.maximumf %16, %17 : vector<32x128xf32>
    %c0_21 = arith.constant 0 : index
    %c16 = arith.constant 16 : index
    %c0_22 = arith.constant 0 : index
    %19 = vector.load %arg6[%c0_21, %c16, %c0_22] : memref<2x24x32xf32, #tpu.memory_space<vmem>>, vector<2x8x32xf32>
    %c0_23 = arith.constant 0 : index
    %c0_24 = arith.constant 0 : index
    %c0_25 = arith.constant 0 : index
    %20 = vector.load %arg6[%c0_23, %c0_24, %c0_25] : memref<2x24x32xf32, #tpu.memory_space<vmem>>, vector<2x8x32xf32>
    tpu.vector_store %arg6[%c0_23, %c0_24, %c0_25], %19 {strides = array<i32>} : memref<2x24x32xf32, #tpu.memory_space<vmem>>, vector<2x8x32xf32>,
    %21 = vector.shape_cast %18 : vector<32x128xf32> to vector<2x16x128xf32>
    %c0_26 = arith.constant 0 : index
    %c0_27 = arith.constant 0 : index
    %c0_28 = arith.constant 0 : index
    %22 = vector.load %arg5[%c0_26, %c0_27, %c0_28] : memref<2x16x128xf32, #tpu.memory_space<vmem>>, vector<2x16x128xf32>
    tpu.vector_store %arg5[%c0_26, %c0_27, %c0_28], %21 {strides = array<i32>} : memref<2x16x128xf32, #tpu.memory_space<vmem>>, vector<2x16x128xf32>,
    return
  }
  func.func @transform_0(%arg0: i32, %arg1: i32) -> (i32, i32, i32) {
    %c0_i32 = arith.constant 0 : i32
    %c0_i32_0 = arith.constant 0 : i32
    return %arg0, %arg1, %c0_i32 : i32, i32, i32
  }
  func.func @transform_1(%arg0: i32, %arg1: i32) -> (i32, i32) {
    %c0_i32 = arith.constant 0 : i32
    %c0_i32_0 = arith.constant 0 : i32
    %c0_i32_1 = arith.constant 0 : i32
    return %c0_i32, %c0_i32_0 : i32, i32
  }
  func.func @transform_2(%arg0: i32, %arg1: i32) -> (i32, i32) {
    %c0_i32 = arith.constant 0 : i32
    %c0_i32_0 = arith.constant 0 : i32
    %c0_i32_1 = arith.constant 0 : i32
    return %c0_i32, %c0_i32_0 : i32, i32
  }
  func.func @transform_3(%arg0: i32, %arg1: i32) -> (i32, i32, i32) {
    %c0_i32 = arith.constant 0 : i32
    %c0_i32_0 = arith.constant 0 : i32
    return %arg0, %arg1, %c0_i32 : i32, i32, i32
  }
}

</mosaic_0001>

<llo_original>
// kernel: tpu_custom_call.1
$region0: #{tpu_custom_call.1}
  #allocation0 [shape = 'u32[]', space=smem, size = 0x4, offset = 0x4, fixed_abs, tag = 'smem constant byte address 0x4 - core index']
  #allocation1 [shape = 'u32[144,128]{1,0:T(1,128)}', space=vmem, size = 0x12000, scoped, tag = 'internal scratch']
  #allocation2 [shape = 'f32[2,24,32]{2,1,0:T(8,128)}', space=vmem, size = 0x6000, scoped, tag = 'scratch operand']
  #allocation3 [shape = 'f32[2,128]{1,0:T(2,128)}', space=vmem, size = 0x400, scoped, tag = 'scratch operand']
  %s0 = inlined_call_operand.hbm [shape: f32[2,16,32], index: 0, kind: input, shape index: {}]
  %s1 = inlined_call_operand.hbm [shape: f32[160,128], index: 1, kind: input, shape index: {}]
  %s2 = inlined_call_operand.vmem [shape: f32[1,128], index: 2, kind: input, shape index: {}]
  %s3 = inlined_call_operand.hbm [shape: f32[2,16,128], index: 3, kind: output, shape index: {}]
  %s4 = sld [smem:[#allocation0]]
  $region34: #{tpu_custom_call.1} parent=0
    _
  %s6 = ssub.s32 1, %s4
  %s7 = scalar_select 0, %s6, %s4
  $region1: #{tpu_custom_call.1} parent=0
    #allocation4 [shape = 'u8[16384]{0}', space=vmem, size = 0x4000, scoped, tag = 'input window, operand 0, single buffered']
    #allocation5 [shape = 's32[1]{0}', space=sflag, size = 0x4, scoped, tag = 'scoped memory for tpu_custom_call.1']
    #allocation6 [shape = 's32[1]{0}', space=sflag, size = 0x4, scoped, tag = 'scoped memory for tpu_custom_call.1']
    #allocation7 [shape = 'u8[81920]{0}', space=vmem, size = 0x14000, scoped, tag = 'input window, operand 1, single buffered']
    #allocation8 [shape = 's32[1]{0}', space=sflag, size = 0x4, scoped, tag = 'scoped memory for tpu_custom_call.1']
    #allocation9 [shape = 'u8[16384]{0}', space=vmem, size = 0x4000, scoped, tag = 'output window, operand 0, single buffered']
    %8 = vsyncpa [#allocation5], 0
    %9 = vsyncpa [#allocation8], 0
    %10 = vsyncpa [#allocation6], 0
    // Predicated region
    $region2: #{tpu_custom_call.1} parent=1 // pred_check
      _
    $region3: #{tpu_custom_call.1} parent=1 // pred_check_branch
      %12 = sbr.rel (0) target = $region5
    $region4: #{tpu_custom_call.1} parent=1 // pred_region
      %s14 = ssub.s32 512, 512
      %15 = vsyncadd [#allocation5], %s14
      %s16 = sshll.u32 [#allocation4], 4
      %s17 = int_to_ptr.vmem [resolvable:$true] %s16
      %22 = dma.hbm_to_vmem [thread:$0]  %s0, 512, %s17, [#allocation5], 128, 128, 8
    $region5: #{tpu_custom_call.1} parent=1 // pred_fallthru
      _
    // Predicated region
    $region6: #{tpu_custom_call.1} parent=1 // pred_check
      _
    $region7: #{tpu_custom_call.1} parent=1 // pred_check_branch
      %24 = sbr.rel (0) target = $region9
    $region8: #{tpu_custom_call.1} parent=1 // pred_region
      %s26 = ssub.s32 2560, 2560
      %27 = vsyncadd [#allocation8], %s26
      %s28 = sshll.u32 [#allocation7], 4
      %s29 = int_to_ptr.vmem [resolvable:$true] %s28
      %34 = dma.hbm_to_vmem [thread:$0]  %s1, 2560, %s29, [#allocation8], 128, 128, 8
    $region9: #{tpu_custom_call.1} parent=1 // pred_fallthru
      _
    // Predicated region
    $region10: #{tpu_custom_call.1} parent=1 // pred_check
      _
    $region11: #{tpu_custom_call.1} parent=1 // pred_check_branch
      %36 = sbr.rel (0) target = $region13
    $region12: #{tpu_custom_call.1} parent=1 // pred_region
      _
    $region13: #{tpu_custom_call.1} parent=1 // pred_fallthru
      _
    // Predicated region
    $region14: #{tpu_custom_call.1} parent=1 // pred_check
      _
    $region15: #{tpu_custom_call.1} parent=1 // pred_check_branch
      %38 = sbr.rel (0) target = $region17
    $region16: #{tpu_custom_call.1} parent=1 // pred_region
      %39 = dma.done [#allocation5], 512
    $region17: #{tpu_custom_call.1} parent=1 // pred_fallthru
      _
    // Predicated region
    $region18: #{tpu_custom_call.1} parent=1 // pred_check
      _
    $region19: #{tpu_custom_call.1} parent=1 // pred_check_branch
      %41 = sbr.rel (0) target = $region21
    $region20: #{tpu_custom_call.1} parent=1 // pred_region
      %42 = dma.done [#allocation8], 2560
    $region21: #{tpu_custom_call.1} parent=1 // pred_fallthru
      _
    %p43 = scmp.eq.s32.totalorder 0, 0
    // Predicated region
    $region22: #{tpu_custom_call.1} parent=1 // pred_check
      %p44 = pneg %p43
    $region23: #{tpu_custom_call.1} parent=1 // pred_check_branch
      %46 = sbr.rel (%p44) target = $region25
    $region24: #{tpu_custom_call.1} parent=1 // pred_region
      %vm47 = vcmask 261120
      %48 = vst.msk [vmem:[#allocation2] sm:$0xff] %vm47, 0.0
      %49 = vst.msk [vmem:[#allocation2 + $0x18] sm:$0xff] %vm47, 0.0
    $region25: #{tpu_custom_call.1} parent=1 // pred_fallthru
      _
    %v50 = vld [vmem:[#allocation4] sm:$0xff]
    %v51 = vld [vmem:[#allocation4 + $0x8] sm:$0xff]
    %v52 = vld [vmem:[#allocation4 + $0x10] sm:$0xff]
    %v53 = vld [vmem:[#allocation4 + $0x18] sm:$0xff]
    %vm54 = vcmask 261120
    %55 = vst.msk [vmem:[#allocation2 + $0x8] sm:$0xff] %vm54, %v50
    %56 = vst.msk [vmem:[#allocation2 + $0x10] sm:$0xff] %vm54, %v51
    %57 = vst.msk [vmem:[#allocation2 + $0x20] sm:$0xff] %vm54, %v52
    %58 = vst.msk [vmem:[#allocation2 + $0x28] sm:$0xff] %vm54, %v53
    %v59 = vld [vmem:[#allocation2 + $0x8] sm:$0xff]
    %v60 = vld [vmem:[#allocation2 + $0x10] sm:$0xff]
    %v61 = vld [vmem:[#allocation2 + $0x20] sm:$0xff]
    %v62 = vld [vmem:[#allocation2 + $0x28] sm:$0xff]
    %v63 = vld [vmem:[#allocation2 + $0x7] sm:$0xff]
    %v64 = vld [vmem:[#allocation2 + $0xf] sm:$0xff]
    %v65 = vld [vmem:[#allocation2 + $0x1f] sm:$0xff]
    %v66 = vld [vmem:[#allocation2 + $0x27] sm:$0xff]
    %v67 = vld [vmem:[#allocation2 + $0x6] sm:$0xff]
    %v68 = vld [vmem:[#allocation2 + $0xe] sm:$0xff]
    %v69 = vld [vmem:[#allocation2 + $0x1e] sm:$0xff]
    %v70 = vld [vmem:[#allocation2 + $0x26] sm:$0xff]
    %v71 = vld [vmem:[#allocation2 + $0x5] sm:$0xff]
    %v72 = vld [vmem:[#allocation2 + $0xd] sm:$0xff]
    %v73 = vld [vmem:[#allocation2 + $0x1d] sm:$0xff]
    %v74 = vld [vmem:[#allocation2 + $0x25] sm:$0xff]
    %v75 = vld [vmem:[#allocation2 + $0x4] sm:$0xff]
    %v76 = vld [vmem:[#allocation2 + $0xc] sm:$0xff]
    %v77 = vld [vmem:[#allocation2 + $0x1c] sm:$0xff]
    %v78 = vld [vmem:[#allocation2 + $0x24] sm:$0xff]
    %83 = vrot.lane.b32.xlu0 %v63, 32
    %v84 = vpop.permute.xlu0 %83
    %85 = vrot.lane.b32.xlu0 %v64, 32
    %v86 = vpop.permute.xlu0 %85
    %87 = vrot.lane.b32.xlu0 %v65, 32
    %v88 = vpop.permute.xlu0 %87
    %89 = vrot.lane.b32.xlu0 %v66, 32
    %v90 = vpop.permute.xlu0 %89
    %99 = vrot.lane.b32.xlu0 %v67, 64
    %v100 = vpop.permute.xlu0 %99
    %101 = vrot.lane.b32.xlu0 %v68, 64
    %v102 = vpop.permute.xlu0 %101
    %103 = vrot.lane.b32.xlu0 %v69, 64
    %v104 = vpop.permute.xlu0 %103
    %105 = vrot.lane.b32.xlu0 %v70, 64
    %v106 = vpop.permute.xlu0 %105
    %115 = vrot.lane.b32.xlu0 %v71, 96
    %v116 = vpop.permute.xlu0 %115
    %117 = vrot.lane.b32.xlu0 %v72, 96
    %v118 = vpop.permute.xlu0 %117
    %119 = vrot.lane.b32.xlu0 %v73, 96
    %v120 = vpop.permute.xlu0 %119
    %121 = vrot.lane.b32.xlu0 %v74, 96
    %v122 = vpop.permute.xlu0 %121
    %v127 = vsel %vm54, %v59, %v84
    %v128 = vsel %vm54, %v60, %v86
    %v129 = vsel %vm54, %v61, %v88
    %v130 = vsel %vm54, %v62, %v90
    %vm131 = vcmask 523264
    %v132 = vsel %vm131, %v127, %v100
    %v133 = vsel %vm131, %v128, %v102
    %v134 = vsel %vm131, %v129, %v104
    %v135 = vsel %vm131, %v130, %v106
    %vm136 = vcmask 785408
    %v137 = vsel %vm136, %v132, %v116
    %v138 = vsel %vm136, %v133, %v118
    %v139 = vsel %vm136, %v134, %v120
    %v140 = vsel %vm136, %v135, %v122
    %v141 = vld [vmem:[#allocation7] sm:$0xff]
    %v142 = vld [vmem:[#allocation7 + $0x8] sm:$0xff]
    %v143 = vld [vmem:[#allocation7 + $0x10] sm:$0xff]
    %v144 = vld [vmem:[#allocation7 + $0x18] sm:$0xff]
    %v145 = vld [vmem:[#allocation7 + $0x20] sm:$0xff]
    %v146 = vld [vmem:[#allocation7 + $0x28] sm:$0xff]
    %v147 = vld [vmem:[#allocation7 + $0x30] sm:$0xff]
    %v148 = vld [vmem:[#allocation7 + $0x38] sm:$0xff]
    %v149 = vld [vmem:[#allocation7 + $0x40] sm:$0xff]
    %v150 = vld [vmem:[#allocation7 + $0x48] sm:$0xff]
    %v151 = vld [vmem:[#allocation7 + $0x50] sm:$0xff]
    %v152 = vld [vmem:[#allocation7 + $0x58] sm:$0xff]
    %v153 = vld [vmem:[#allocation7 + $0x60] sm:$0xff]
    %v154 = vld [vmem:[#allocation7 + $0x68] sm:$0xff]
    %v155 = vld [vmem:[#allocation7 + $0x70] sm:$0xff]
    %v156 = vld [vmem:[#allocation7 + $0x78] sm:$0xff]
    %v157 = vld [vmem:[#allocation7 + $0x80] sm:$0xff]
    %v158 = vld [vmem:[#allocation7 + $0x88] sm:$0xff]
    %v159 = vld [vmem:[#allocation7 + $0x90] sm:$0xff]
    %v160 = vld [vmem:[#allocation7 + $0x98] sm:$0xff]
    %v161 = vld [vmem:[%s2] sm:$0x1]
    %v163 = vlaneseq
    %v164 = vshrl.u32 %v163, 7
    %v165 = vsub.s32 0, %v164
    %v166 = vrot.slane %v161, %v165
    %v169 = vsel %vm54, %v75, 0
    %v172 = vsel %vm54, %v76, 0
    %v175 = vsel %vm54, %v77, 0
    %v178 = vsel %vm54, %v78, 0
    %180 = vmatprep.subr.mxu0 0.0
    %181 = vmatpush1.msra.mxu0 %v156
    %182 = vmatprep.subr.mxu0 0.0
    %183 = vmatpush1.msra.mxu0 %v155
    %184 = vmatprep.subr.mxu0 0.0
    %185 = vmatpush1.msra.mxu0 %v154
    %186 = vmatprep.subr.mxu0 0.0
    %187 = vmatpush1.msra.mxu0 %v153
    %188 = vmatprep.subr.mxu0 0.0
    %189 = vmatpush1.msra.mxu0 %v152
    %190 = vmatprep.subr.mxu0 0.0
    %191 = vmatpush1.msra.mxu0 %v151
    %192 = vmatprep.subr.mxu0 0.0
    %193 = vmatpush1.msra.mxu0 %v150
    %194 = vmatprep.subr.mxu0 0.0
    %195 = vmatpush1.msra.mxu0 %v149
    %196 = vmatprep.subr.mxu0 0.0
    %197 = vmatpush1.msra.mxu0 %v148
    %198 = vmatprep.subr.mxu0 0.0
    %199 = vmatpush1.msra.mxu0 %v147
    %200 = vmatprep.subr.mxu0 0.0
    %201 = vmatpush1.msra.mxu0 %v146
    %202 = vmatprep.subr.mxu0 0.0
    %203 = vmatpush1.msra.mxu0 %v145
    %204 = vmatprep.subr.mxu0 0.0
    %205 = vmatpush1.msra.mxu0 %v144
    %206 = vmatprep.subr.mxu0 0.0
    %207 = vmatpush1.msra.mxu0 %v143
    %208 = vmatprep.subr.mxu0 0.0
    %209 = vmatpush1.msra.mxu0 %v142
    %210 = vmatprep.subr.mxu0 0.0
    %211 = vmatpush1.msra.mxu0 %v141
    %212 = vmatprep.subr.mxu0 0.0
    %213 = vmatpush2.msra.mxu0 0.0
    %214 = vmatprep.subr.mxu0 0.0
    %215 = vmatpush2.msra.mxu0 0.0
    %216 = vmatprep.subr.mxu0 0.0
    %217 = vmatpush2.msra.mxu0 0.0
    %218 = vmatprep.subr.mxu0 0.0
    %219 = vmatpush2.msra.mxu0 0.0
    %220 = vmatprep.subr.mxu0 0.0
    %221 = vmatpush2.msra.mxu0 0.0
    %222 = vmatprep.subr.mxu0 0.0
    %223 = vmatpush2.msra.mxu0 0.0
    %224 = vmatprep.subr.mxu0 0.0
    %225 = vmatpush2.msra.mxu0 0.0
    %226 = vmatprep.subr.mxu0 0.0
    %227 = vmatpush2.msra.mxu0 0.0
    %228 = vmatprep.subr.mxu0 0.0
    %229 = vmatpush2.msra.mxu0 0.0
    %230 = vmatprep.subr.mxu0 0.0
    %231 = vmatpush2.msra.mxu0 0.0
    %232 = vmatprep.subr.mxu0 0.0
    %233 = vmatpush2.msra.mxu0 0.0
    %234 = vmatprep.subr.mxu0 0.0
    %235 = vmatpush2.msra.mxu0 0.0
    %236 = vmatprep.subr.mxu0 0.0
    %237 = vmatpush2.msra.mxu0 %v160
    %238 = vmatprep.subr.mxu0 0.0
    %239 = vmatpush2.msra.mxu0 %v159
    %240 = vmatprep.subr.mxu0 0.0
    %241 = vmatpush2.msra.mxu0 %v158
    %242 = vmatprep.subr.mxu0 0.0
    %243 = vmatpush2.msra.mxu0 %v157
    %244 = vmatprep.mubr.f32.mxu0 %v169
    %245 = vmatmul.mubr.f32.gmra.mxu0 %v137
    %v246 = vpop.f32.mrf.mxu0
    %v247 = vadd.f32 %v166, %v246
    %v248 = vpop.f32.mrf.mxu0
    %249 = vmatprep.mubr.f32.mxu0 %v172
    %250 = vmatmul.mubr.f32.gmra.mxu0 %v138
    %v251 = vpop.f32.mrf.mxu0
    %v252 = vadd.f32 %v166, %v251
    %v253 = vpop.f32.mrf.mxu0
    %254 = vmatprep.mubr.f32.mxu0 %v175
    %255 = vmatmul.mubr.f32.gmra.mxu0 %v139
    %v256 = vpop.f32.mrf.mxu0
    %v257 = vadd.f32 %v166, %v256
    %v258 = vpop.f32.mrf.mxu0
    %259 = vmatprep.mubr.f32.mxu0 %v178
    %260 = vmatmul.mubr.f32.gmra.mxu0 %v140
    %v261 = vpop.f32.mrf.mxu0
    %v262 = vadd.f32 %v166, %v261
    %v263 = vpop.f32.mrf.mxu0
    %264 = vdwg.mxu0
    %v265 = vmax.f32 %v247, 0.0
    %v266 = vmax.f32 %v252, 0.0
    %v267 = vmax.f32 %v257, 0.0
    %v268 = vmax.f32 %v262, 0.0
    %269 = vst.msk [vmem:[#allocation2] sm:$0xff] %vm54, %v60
    %270 = vst.msk [vmem:[#allocation2 + $0x18] sm:$0xff] %vm54, %v62
    %271 = vst [vmem:[#allocation9] sm:$0xff] %v265
    %272 = vst [vmem:[#allocation9 + $0x8] sm:$0xff] %v266
    %273 = vst [vmem:[#allocation9 + $0x10] sm:$0xff] %v267
    %274 = vst [vmem:[#allocation9 + $0x18] sm:$0xff] %v268
    // Predicated region
    $region26: #{tpu_custom_call.1} parent=1 // pred_check
      _
    $region27: #{tpu_custom_call.1} parent=1 // pred_check_branch
      %276 = sbr.rel (0) target = $region29
    $region28: #{tpu_custom_call.1} parent=1 // pred_region
      %s278 = ssub.s32 512, 512
      %279 = vsyncadd [#allocation6], %s278
      %s280 = sshll.u32 [#allocation9], 4
      %s281 = int_to_ptr.vmem [resolvable:$true] %s280
      %286 = dma.vmem_to_hbm [thread:$0]  %s281, 512, %s3, [#allocation6], 128, 128, 8
    $region29: #{tpu_custom_call.1} parent=1 // pred_fallthru
      _
    // Predicated region
    $region30: #{tpu_custom_call.1} parent=1 // pred_check
      _
    $region31: #{tpu_custom_call.1} parent=1 // pred_check_branch
      %288 = sbr.rel (0) target = $region33
    $region32: #{tpu_custom_call.1} parent=1 // pred_region
      %289 = dma.done [#allocation6], 512
    $region33: #{tpu_custom_call.1} parent=1 // pred_fallthru
      _
    %290 = vsyncpa [#allocation5], 1
    %291 = vsyncpa [#allocation8], 1
    %292 = vsyncpa [#allocation6], 1

</llo_original>
